<compile_context>
chip_gen: v7x
topology: tpu7x:2x2x1
jax: 0.10.0
libtpu: 0.0.40
codegen_flags: <defaults>
</compile_context>

<pallas_src>
from typing import NamedTuple

import jax
import jax.numpy as jnp
from jax.experimental import pallas as pl
from jax.experimental.pallas import tpu as pltpu


def _round_up(x: int, m: int) -> int:
    return ((x + m - 1) // m) * m


class FusedHeadLayout(NamedTuple):
    num_classes: int
    num_bbox: int
    cls_pad: int   # 128-aligned start column of the bbox group
    k_pad: int     # total fused (lane-dense) output columns


def prepare_predictor_params(w_cls, b_cls, w_bbox, b_bbox,
                             compute_dtype=None):
    """One-time fusion of the two Linear heads into a lane-dense weight.

    Args:
      w_cls:  (C, num_classes)       -- transposed vs. torch's (num_classes, C)
      b_cls:  (num_classes,)
      w_bbox: (C, num_classes * 4)
      b_bbox: (num_classes * 4,)
      compute_dtype: dtype for the stored weights / x stream (e.g.
        jnp.bfloat16 on v6e/v7x).  Accumulation and bias stay f32.

    Returns:
      (w_fused, b_fused, layout)
    """
    c, num_classes = w_cls.shape
    num_bbox = w_bbox.shape[1]
    cls_pad = _round_up(num_classes, 128)
    k_pad = _round_up(cls_pad + num_bbox, 128)

    w_fused = jnp.zeros((c, k_pad), dtype=jnp.float32)
    w_fused = w_fused.at[:, :num_classes].set(w_cls.astype(jnp.float32))
    w_fused = w_fused.at[:, cls_pad:cls_pad + num_bbox].set(
        w_bbox.astype(jnp.float32))
    if compute_dtype is not None:
        w_fused = w_fused.astype(compute_dtype)

    # Bias kept f32: added after the f32 MXU accumulation.
    b_fused = jnp.zeros((1, k_pad), dtype=jnp.float32)
    b_fused = b_fused.at[0, :num_classes].set(b_cls.astype(jnp.float32))
    b_fused = b_fused.at[0, cls_pad:cls_pad + num_bbox].set(
        b_bbox.astype(jnp.float32))

    layout = FusedHeadLayout(num_classes=num_classes, num_bbox=num_bbox,
                             cls_pad=cls_pad, k_pad=k_pad)
    return w_fused, b_fused, layout


def _fused_head_kernel(x_ref, w_ref, b_ref, out_ref):
    # One MXU matmul over the fused lane-dense output columns; f32 accumulate,
    # bias add on the VPU (free filler under MXU slack).
    acc = jnp.dot(x_ref[...], w_ref[...], preferred_element_type=jnp.float32)
    out_ref[...] = (acc + b_ref[...]).astype(out_ref.dtype)


def predictor_forward(x, w_fused, b_fused, layout: FusedHeadLayout, *,
                      tile_n=256):
    """Pallas implementation of Predictor.forward.

    Args:
      x: (N, C) or (N, C, 1, 1) array.
      w_fused, b_fused, layout: output of `prepare_predictor_params`.
      tile_n: RoI rows per grid step.

    Returns:
      (scores, bbox_deltas): (N, num_classes) and (N, num_classes * 4), f32.
    """
    if x.ndim == 4:
        assert x.shape[2:] == (1, 1), "x has the wrong shape"
    x = x.reshape(x.shape[0], -1)
    n, c = x.shape
    assert c == w_fused.shape[0], "channel mismatch between x and weights"
    k_pad = w_fused.shape[1]

    # Match the stored-weight compute dtype (bf16 path on v6e/v7x).
    if x.dtype != w_fused.dtype:
        x = x.astype(w_fused.dtype)

    # --- RoI-axis tiling ------------------------------------------------
    # Multiple of 8 (sublane constraint).  Cap so there are >= 4 tiles when N
    # is large enough: on v7x the two TensorCores each get >= 2 pipelined
    # steps (x DMA overlapped with compute); single-TC chips just amortize.
    tn = _round_up(min(tile_n, n), 8)
    if n > 4 * 8:
        tn = min(tn, _round_up(pl.cdiv(n, 4), 8))
    grid = (pl.cdiv(n, tn),)   # ragged edge handled by Pallas; no x padding

    x_bytes = x.dtype.itemsize
    w_bytes = w_fused.dtype.itemsize
    out_bytes = jnp.dtype(jnp.float32).itemsize

    cost = pl.CostEstimate(
        flops=2 * n * c * k_pad,
        transcendentals=0,
        bytes_accessed=(n * c * x_bytes + c * k_pad * w_bytes
                        + n * k_pad * out_bytes + k_pad * out_bytes),
    )

    # Working set: double-buffered x/out tiles + (double-buffered) resident
    # fused weight + bias.  Raise the scoped VMEM limit if it would not fit
    # the small defaults (16 MiB v5e / 32 MiB v6e, v7x).
    needed = (2 * tn * c * x_bytes + 2 * tn * k_pad * out_bytes
              + 2 * c * k_pad * w_bytes + 2 * k_pad * out_bytes)
    vmem_limit = max(int(needed * 1.5) + (1 << 20), 32 * 1024 * 1024)

    out = pl.pallas_call(
        _fused_head_kernel,
        out_shape=jax.ShapeDtypeStruct((n, k_pad), jnp.float32),
        grid=grid,
        in_specs=[
            pl.BlockSpec((tn, c), lambda i: (i, 0)),        # x tile, pipelined
            pl.BlockSpec((c, k_pad), lambda i: (0, 0)),     # fused W, resident
            pl.BlockSpec((1, k_pad), lambda i: (0, 0)),     # fused b, resident
        ],
        out_specs=pl.BlockSpec((tn, k_pad), lambda i: (i, 0)),
        compiler_params=pltpu.CompilerParams(
            dimension_semantics=("parallel",),
            vmem_limit_bytes=vmem_limit),
        cost_estimate=cost,
    )(x, w_fused, b_fused)

    # Both slice starts are 128-lane aligned (0 and cls_pad).
    scores = out[:, :layout.num_classes]
    bbox_deltas = out[:, layout.cls_pad:layout.cls_pad + layout.num_bbox]
    return scores, bbox_deltas


def init_predictor_params(key, in_channels, num_classes, dtype=jnp.float32):
    """Synthetic init mimicking nn.Linear's U(-1/sqrt(fan_in), 1/sqrt(fan_in)).
    Weights stored pre-transposed as (C, K)."""
    k1, k2, k3, k4 = jax.random.split(key, 4)
    bound = 1.0 / jnp.sqrt(jnp.float32(in_channels))
    w_cls = jax.random.uniform(k1, (in_channels, num_classes), dtype,
                               minval=-bound, maxval=bound)
    b_cls = jax.random.uniform(k2, (num_classes,), dtype,
                               minval=-bound, maxval=bound)
    w_bbox = jax.random.uniform(k3, (in_channels, num_classes * 4), dtype,
                                minval=-bound, maxval=bound)
    b_bbox = jax.random.uniform(k4, (num_classes * 4,), dtype,
                                minval=-bound, maxval=bound)
    return w_cls, b_cls, w_bbox, b_bbox


def _check(batch, in_channels, num_classes, key, tile_n=256, four_d=True,
           compute_dtype=None, atol=1e-5, rtol=1e-5):
    k_x, k_p = jax.random.split(key)
    shape = (batch, in_channels, 1, 1) if four_d else (batch, in_channels)
    x = jax.random.normal(k_x, shape, dtype=jnp.float32)
    w_cls, b_cls, w_bbox, b_bbox = init_predictor_params(
        k_p, in_channels, num_classes)

    w_fused, b_fused, layout = prepare_predictor_params(
        w_cls, b_cls, w_bbox, b_bbox, compute_dtype=compute_dtype)

    scores, bbox_deltas = predictor_forward(
        x, w_fused, b_fused, layout, tile_n=tile_n)
    jax.block_until_ready((scores, bbox_deltas))

    x2 = x.reshape(batch, in_channels)
    ref_scores = x2 @ w_cls + b_cls
    ref_bbox = x2 @ w_bbox + b_bbox
    assert scores.shape == (batch, num_classes)
    assert bbox_deltas.shape == (batch, num_classes * 4)
    assert jnp.allclose(scores, ref_scores, atol=atol, rtol=rtol)
    assert jnp.allclose(bbox_deltas, ref_bbox, atol=atol, rtol=rtol)


if __name__ == "__main__":
    key = jax.random.PRNGKey(0)
    k1, k2, k3 = jax.random.split(key, 3)

    # Small demo: 8 RoIs, 32 channels, 8 classes, 4-D (N, C, 1, 1) input as
    # produced by RoI pooling + box-head avg-pool.
    _check(batch=8, in_channels=32, num_classes=8, key=k1)

    # Multi-step grid with a ragged N edge (no explicit row padding) and a
    # fused K padded to 128 with a lane-aligned bbox offset.
    _check(batch=37, in_channels=128, num_classes=16, key=k2, tile_n=16,
           four_d=False)

    # bf16 compute path (f32 accumulate / bias / output), looser tolerance.
    _check(batch=64, in_channels=128, num_classes=16, key=k3, tile_n=16,
           four_d=False, compute_dtype=jnp.bfloat16, atol=5e-2, rtol=5e-2)

    print("KERNEL_OK")
</pallas_src>

<mosaic_0001>
module attributes {stable_mosaic.version = 11 : i64} {
  func.func @_fused_head_kernel(%arg0: i32, %arg1: memref<8x32xf32, #tpu.memory_space<vmem>>, %arg2: memref<32x256xf32, #tpu.memory_space<vmem>>, %arg3: memref<1x256xf32, #tpu.memory_space<vmem>>, %arg4: memref<8x256xf32, #tpu.memory_space<vmem>>) attributes {dimension_semantics = [#tpu.dimension_semantics<parallel>], iteration_bounds = array<i64: 1>, scalar_prefetch = 0 : i64, scratch_operands = 0 : i64, tpu.core_type = #tpu.core_type<tc>, window_params = [{transform_indices = @transform_0, window_bounds = array<i64: 8, 32>}, {pipeline_mode = #tpu.pipeline_mode<synchronous>, transform_indices = @transform_1, window_bounds = array<i64: 32, 256>}, {pipeline_mode = #tpu.pipeline_mode<synchronous>, transform_indices = @transform_2, window_bounds = array<i64: 1, 256>}, {transform_indices = @transform_3, window_bounds = array<i64: 8, 256>}]} {
    %c0 = arith.constant 0 : index
    %c0_0 = arith.constant 0 : index
    %0 = vector.load %arg1[%c0, %c0_0] : memref<8x32xf32, #tpu.memory_space<vmem>>, vector<8x32xf32>
    %c0_1 = arith.constant 0 : index
    %c0_2 = arith.constant 0 : index
    %1 = vector.load %arg2[%c0_1, %c0_2] : memref<32x256xf32, #tpu.memory_space<vmem>>, vector<32x256xf32>
    %cst = arith.constant dense<0.000000e+00> : vector<8x256xf32>
    %2 = tpu.matmul %0, %1, %cst {dimension_numbers = #tpu.dot_dimension_numbers<[1], [0], [0], [1], [0, 0, 1, 1], [], []>} : vector<8x32xf32>, vector<32x256xf32>, vector<8x256xf32> -> vector<8x256xf32>
    %c0_3 = arith.constant 0 : index
    %c0_4 = arith.constant 0 : index
    %3 = vector.load %arg3[%c0_3, %c0_4] : memref<1x256xf32, #tpu.memory_space<vmem>>, vector<1x256xf32>
    %4 = vector.broadcast %3 : vector<1x256xf32> to vector<8x256xf32>
    %5 = arith.addf %2, %4 : vector<8x256xf32>
    %c0_5 = arith.constant 0 : index
    %c0_6 = arith.constant 0 : index
    %6 = vector.load %arg4[%c0_5, %c0_6] : memref<8x256xf32, #tpu.memory_space<vmem>>, vector<8x256xf32>
    tpu.vector_store %arg4[%c0_5, %c0_6], %5 {strides = array<i32>} : memref<8x256xf32, #tpu.memory_space<vmem>>, vector<8x256xf32>,
    return
  }
  func.func @transform_0(%arg0: i32) -> (i32, i32) {
    %c0_i32 = arith.constant 0 : i32
    %c0_i32_0 = arith.constant 0 : i32
    return %arg0, %c0_i32 : i32, i32
  }
  func.func @transform_1(%arg0: i32) -> (i32, i32) {
    %c0_i32 = arith.constant 0 : i32
    %c0_i32_0 = arith.constant 0 : i32
    %c0_i32_1 = arith.constant 0 : i32
    return %c0_i32, %c0_i32_0 : i32, i32
  }
  func.func @transform_2(%arg0: i32) -> (i32, i32) {
    %c0_i32 = arith.constant 0 : i32
    %c0_i32_0 = arith.constant 0 : i32
    %c0_i32_1 = arith.constant 0 : i32
    return %c0_i32, %c0_i32_0 : i32, i32
  }
  func.func @transform_3(%arg0: i32) -> (i32, i32) {
    %c0_i32 = arith.constant 0 : i32
    %c0_i32_0 = arith.constant 0 : i32
    return %arg0, %c0_i32 : i32, i32
  }
}

</mosaic_0001>

<llo_original>
// kernel: tpu_custom_call.1
$region0: #{tpu_custom_call.1}
  #allocation0 [shape = 'u32[]', space=smem, size = 0x4, offset = 0x4, fixed_abs, tag = 'smem constant byte address 0x4 - core index']
  #allocation1 [shape = 'u32[144,128]{1,0:T(1,128)}', space=vmem, size = 0x12000, scoped, tag = 'internal scratch']
  %s0 = inlined_call_operand.hbm [shape: f32[8,32], index: 0, kind: input, shape index: {}]
  %s1 = inlined_call_operand.hbm [shape: f32[32,256], index: 1, kind: input, shape index: {}]
  %s2 = inlined_call_operand.vmem [shape: f32[1,256], index: 2, kind: input, shape index: {}]
  %s3 = inlined_call_operand.hbm [shape: f32[8,256], index: 3, kind: output, shape index: {}]
  %s4 = sld [smem:[#allocation0]]
  $region30: #{tpu_custom_call.1} parent=0
    _
  %s6 = ssub.s32 1, %s4
  %s7 = scalar_select 0, %s6, %s4
  $region1: #{tpu_custom_call.1} parent=0
    #allocation2 [shape = 'u8[4096]{0}', space=vmem, size = 0x1000, scoped, tag = 'input window, operand 0, single buffered']
    #allocation3 [shape = 's32[1]{0}', space=sflag, size = 0x4, scoped, tag = 'scoped memory for tpu_custom_call.1']
    #allocation4 [shape = 's32[1]{0}', space=sflag, size = 0x4, scoped, tag = 'scoped memory for tpu_custom_call.1']
    #allocation5 [shape = 'u8[32768]{0}', space=vmem, size = 0x8000, scoped, tag = 'input window, operand 1, single buffered']
    #allocation6 [shape = 's32[1]{0}', space=sflag, size = 0x4, scoped, tag = 'scoped memory for tpu_custom_call.1']
    #allocation7 [shape = 'u8[8192]{0}', space=vmem, size = 0x2000, scoped, tag = 'output window, operand 0, single buffered']
    %8 = vsyncpa [#allocation3], 0
    %9 = vsyncpa [#allocation6], 0
    %10 = vsyncpa [#allocation4], 0
    // Predicated region
    $region2: #{tpu_custom_call.1} parent=1 // pred_check
      _
    $region3: #{tpu_custom_call.1} parent=1 // pred_check_branch
      %12 = sbr.rel (0) target = $region5
    $region4: #{tpu_custom_call.1} parent=1 // pred_region
      %s14 = ssub.s32 128, 128
      %15 = vsyncadd [#allocation3], %s14
      %s17 = sshll.u32 [#allocation2], 4
      %s18 = int_to_ptr.vmem [resolvable:$true] %s17
      %20 = dma.hbm_to_vmem [thread:$0]  %s0, 128, %s18, [#allocation3]
    $region5: #{tpu_custom_call.1} parent=1 // pred_fallthru
      _
    // Predicated region
    $region6: #{tpu_custom_call.1} parent=1 // pred_check
      _
    $region7: #{tpu_custom_call.1} parent=1 // pred_check_branch
      %22 = sbr.rel (0) target = $region9
    $region8: #{tpu_custom_call.1} parent=1 // pred_region
      %s24 = ssub.s32 1024, 1024
      %25 = vsyncadd [#allocation6], %s24
      %s26 = sshll.u32 [#allocation5], 4
      %s27 = int_to_ptr.vmem [resolvable:$true] %s26
      %32 = dma.hbm_to_vmem [thread:$0]  %s1, 1024, %s27, [#allocation6], 256, 256, 16
    $region9: #{tpu_custom_call.1} parent=1 // pred_fallthru
      _
    // Predicated region
    $region10: #{tpu_custom_call.1} parent=1 // pred_check
      _
    $region11: #{tpu_custom_call.1} parent=1 // pred_check_branch
      %34 = sbr.rel (0) target = $region13
    $region12: #{tpu_custom_call.1} parent=1 // pred_region
      _
    $region13: #{tpu_custom_call.1} parent=1 // pred_fallthru
      _
    // Predicated region
    $region14: #{tpu_custom_call.1} parent=1 // pred_check
      _
    $region15: #{tpu_custom_call.1} parent=1 // pred_check_branch
      %36 = sbr.rel (0) target = $region17
    $region16: #{tpu_custom_call.1} parent=1 // pred_region
      %37 = dma.done [#allocation3], 128
    $region17: #{tpu_custom_call.1} parent=1 // pred_fallthru
      _
    // Predicated region
    $region18: #{tpu_custom_call.1} parent=1 // pred_check
      _
    $region19: #{tpu_custom_call.1} parent=1 // pred_check_branch
      %39 = sbr.rel (0) target = $region21
    $region20: #{tpu_custom_call.1} parent=1 // pred_region
      %40 = dma.done [#allocation6], 1024
    $region21: #{tpu_custom_call.1} parent=1 // pred_fallthru
      _
    %v41 = vld [vmem:[#allocation2] sm:$0xff]
    %v42 = vld [vmem:[#allocation5] sm:$0xff]
    %v43 = vld [vmem:[#allocation5 + $0x8] sm:$0xff]
    %v44 = vld [vmem:[#allocation5 + $0x10] sm:$0xff]
    %v45 = vld [vmem:[#allocation5 + $0x18] sm:$0xff]
    %v46 = vld [vmem:[#allocation5 + $0x20] sm:$0xff]
    %v47 = vld [vmem:[#allocation5 + $0x28] sm:$0xff]
    %v48 = vld [vmem:[#allocation5 + $0x30] sm:$0xff]
    %v49 = vld [vmem:[#allocation5 + $0x38] sm:$0xff]
    %v50 = vld [vmem:[%s2] sm:$0x3]
    %v52 = vlaneseq
    %v53 = vshrl.u32 %v52, 7
    %v54 = vsub.s32 0, %v53
    %v55 = vrot.slane %v50, %v54
    %v56 = vlaneseq
    %v57 = vshrl.u32 %v56, 7
    %v58 = vsub.s32 1, %v57
    %v59 = vrot.slane %v50, %v58
    %vm62 = vcmask 261120
    %v64 = vsel %vm62, %v41, 0
    %66 = vmatprep.subr.mxu0 %v43
    %67 = vmatpush1.msra.mxu0 %v42
    %68 = vmatprep.subr.mxu0 %v45
    %69 = vmatpush1.msra.mxu0 %v44
    %70 = vmatprep.subr.mxu0 %v47
    %71 = vmatpush1.msra.mxu0 %v46
    %72 = vmatprep.subr.mxu0 %v49
    %73 = vmatpush1.msra.mxu0 %v48
    %74 = vmatprep.subr.mxu0 0.0
    %75 = vmatpush1.msra.mxu0 0.0
    %76 = vmatprep.subr.mxu0 0.0
    %77 = vmatpush1.msra.mxu0 0.0
    %78 = vmatprep.subr.mxu0 0.0
    %79 = vmatpush1.msra.mxu0 0.0
    %80 = vmatprep.subr.mxu0 0.0
    %81 = vmatpush1.msra.mxu0 0.0
    %82 = vmatprep.subr.mxu0 0.0
    %83 = vmatpush1.msra.mxu0 0.0
    %84 = vmatprep.subr.mxu0 0.0
    %85 = vmatpush1.msra.mxu0 0.0
    %86 = vmatprep.subr.mxu0 0.0
    %87 = vmatpush1.msra.mxu0 0.0
    %88 = vmatprep.subr.mxu0 0.0
    %89 = vmatpush1.msra.mxu0 0.0
    %90 = vmatprep.subr.mxu0 0.0
    %91 = vmatpush1.msra.mxu0 0.0
    %92 = vmatprep.subr.mxu0 0.0
    %93 = vmatpush1.msra.mxu0 0.0
    %94 = vmatprep.subr.mxu0 0.0
    %95 = vmatpush1.msra.mxu0 0.0
    %96 = vmatprep.subr.mxu0 0.0
    %97 = vmatpush1.msra.mxu0 0.0
    %98 = vmatprep.subr.mxu0 0.0
    %99 = vmatpush1.msra.mxu0 0.0
    %100 = vmatprep.subr.mxu0 0.0
    %101 = vmatpush1.msra.mxu0 0.0
    %102 = vmatprep.subr.mxu0 0.0
    %103 = vmatpush1.msra.mxu0 0.0
    %104 = vmatprep.subr.mxu0 0.0
    %105 = vmatpush1.msra.mxu0 0.0
    %106 = vmatprep.subr.mxu0 0.0
    %107 = vmatpush1.msra.mxu0 0.0
    %108 = vmatprep.subr.mxu0 0.0
    %109 = vmatpush1.msra.mxu0 0.0
    %110 = vmatprep.subr.mxu0 0.0
    %111 = vmatpush1.msra.mxu0 0.0
    %112 = vmatprep.subr.mxu0 0.0
    %113 = vmatpush1.msra.mxu0 0.0
    %114 = vmatprep.subr.mxu0 0.0
    %115 = vmatpush1.msra.mxu0 0.0
    %116 = vmatprep.subr.mxu0 0.0
    %117 = vmatpush1.msra.mxu0 0.0
    %118 = vmatprep.subr.mxu0 0.0
    %119 = vmatpush1.msra.mxu0 0.0
    %120 = vmatprep.subr.mxu0 0.0
    %121 = vmatpush1.msra.mxu0 0.0
    %122 = vmatprep.subr.mxu0 0.0
    %123 = vmatpush1.msra.mxu0 0.0
    %124 = vmatprep.subr.mxu0 0.0
    %125 = vmatpush1.msra.mxu0 0.0
    %126 = vmatprep.subr.mxu0 0.0
    %127 = vmatpush1.msra.mxu0 0.0
    %128 = vmatprep.subr.mxu0 0.0
    %129 = vmatpush1.msra.mxu0 0.0
    %130 = vmatprep.mubr.f32.mxu0 0.0
    %131 = vmatmul.mubr.f32.gmra.mrb[0].mxu0 %v64
    %v132 = vpop.f32.mrb[0].mxu0
    %v133 = vadd.f32 %v55, %v132
    %v134 = vpop.f32.mrb[0].mxu0
    %v135 = vadd.f32 %v59, %v134
    %136 = vdwg.mxu0
    %137 = vst [vmem:[#allocation7] sm:$0xff] %v133
    %138 = vst [vmem:[#allocation7 + $0x8] sm:$0xff] %v135
    // Predicated region
    $region22: #{tpu_custom_call.1} parent=1 // pred_check
      _
    $region23: #{tpu_custom_call.1} parent=1 // pred_check_branch
      %140 = sbr.rel (0) target = $region25
    $region24: #{tpu_custom_call.1} parent=1 // pred_region
      %s142 = ssub.s32 256, 256
      %143 = vsyncadd [#allocation4], %s142
      %s145 = sshll.u32 [#allocation7], 4
      %s146 = int_to_ptr.vmem [resolvable:$true] %s145
      %148 = dma.vmem_to_hbm [thread:$0]  %s146, 256, %s3, [#allocation4]
    $region25: #{tpu_custom_call.1} parent=1 // pred_fallthru
      _
    // Predicated region
    $region26: #{tpu_custom_call.1} parent=1 // pred_check
      _
    $region27: #{tpu_custom_call.1} parent=1 // pred_check_branch
      %150 = sbr.rel (0) target = $region29
    $region28: #{tpu_custom_call.1} parent=1 // pred_region
      %151 = dma.done [#allocation4], 256
    $region29: #{tpu_custom_call.1} parent=1 // pred_fallthru
      _
    %152 = vsyncpa [#allocation3], 1
    %153 = vsyncpa [#allocation6], 1
    %154 = vsyncpa [#allocation4], 1

</llo_original>
